<compile_context>
chip_gen: v5e
topology: v5e:2x2
jax: 0.10.0
libtpu: 0.0.40
codegen_flags: <defaults>
</compile_context>

<pallas_src>
import functools

import jax
import jax.numpy as jnp
from jax.experimental import pallas as pl
from jax.experimental.pallas import tpu as pltpu


def _halliculator_kernel(x_ref, noise_ref,
                         w1_ref, b1_ref,
                         w2_ref, b2_ref,
                         w3_ref, b3_ref,
                         o_ref):
    # x + N(0,1) noise (bf16 add on the VPU; upcast automatically on v5e).
    x = x_ref[...] + noise_ref[...]

    # fc1 + ReLU  (bf16 MXU inputs, f32 accumulation + bias)
    h = jnp.dot(x, w1_ref[...], preferred_element_type=jnp.float32) + b1_ref[...]
    h = jnp.maximum(h, 0.0).astype(w2_ref.dtype)

    # fc2 + ReLU
    h = jnp.dot(h, w2_ref[...], preferred_element_type=jnp.float32) + b2_ref[...]
    h = jnp.maximum(h, 0.0).astype(w3_ref.dtype)

    # fc3 + ReLU
    h = jnp.dot(h, w3_ref[...], preferred_element_type=jnp.float32) + b3_ref[...]
    o_ref[...] = jnp.maximum(h, 0.0).astype(o_ref.dtype)


def _round_up(x, m):
    return (x + m - 1) // m * m


@functools.partial(jax.jit, static_argnames=("max_block_b", "compute_dtype"))
def halliculator_forward(x, noise, params, max_block_b=256,
                         compute_dtype=jnp.bfloat16):
    """Fused (x+noise) -> fc1 -> relu -> fc2 -> relu -> fc3 -> relu."""
    w1, b1, w2, b2, w3, b3 = params
    B, F = x.shape
    I = w1.shape[1]
    out_dtype = x.dtype

    # ---- choose batch tile -------------------------------------------------
    # multiple of 16 (bf16 sublane packing), as large as possible (MXU rows),
    # but split into >= 2 grid steps when the batch allows (v7x megacore).
    padded_min = _round_up(B, 16)
    block_b = min(max_block_b, padded_min)
    if padded_min // block_b < 2 and padded_min >= 32:
        block_b = _round_up(padded_min // 2, 16)
    pB = _round_up(B, block_b)
    grid = (pB // block_b,)

    # ---- prepare inputs (pad ragged batch, cast MXU operands to bf16) ------
    if pB != B:
        pad = ((0, pB - B), (0, 0))
        xc = jnp.pad(x, pad).astype(compute_dtype)
        nc = jnp.pad(noise, pad).astype(compute_dtype)
    else:
        xc = x.astype(compute_dtype)
        nc = noise.astype(compute_dtype)

    w1c = w1.astype(compute_dtype)
    w2c = w2.astype(compute_dtype)
    w3c = w3.astype(compute_dtype)
    b1r = b1.reshape(1, I).astype(jnp.float32)
    b2r = b2.reshape(1, I).astype(jnp.float32)
    b3r = b3.reshape(1, F).astype(jnp.float32)

    # ---- VMEM budget & cost estimate ---------------------------------------
    cbytes = jnp.dtype(compute_dtype).itemsize
    obytes = jnp.dtype(out_dtype).itemsize
    w_elems = F * I + I * I + I * F
    act_tile = block_b * F
    vmem_need = (
        2 * w_elems * cbytes              # resident weights (double-buffered)
        + 2 * 2 * act_tile * cbytes       # x + noise tiles (double-buffered)
        + 2 * act_tile * obytes           # out tile (double-buffered)
        + 2 * (2 * I + F) * 4             # biases
        + 3 * block_b * max(I, F) * 4     # f32 intermediates h1/h2/h3
        + (4 << 20)                       # headroom
    )
    vmem_limit = int(min(max(vmem_need, 32 << 20), 64 << 20))
    # TODO(synk): for innerdim >= ~4096 the resident W2 (I*I) no longer fits
    # VMEM (especially v7x's 64 MiB) -- K-tile the fc2 contraction with an
    # "arbitrary" reduction grid axis + f32 accumulator scratch instead.

    cost = pl.CostEstimate(
        flops=2 * pB * (F * I + I * I + I * F),
        transcendentals=0,
        bytes_accessed=(2 * pB * F * cbytes          # x + noise
                        + pB * F * obytes            # out
                        + w_elems * cbytes           # weights
                        + (2 * I + F) * 4),          # biases
    )

    out_padded = pl.pallas_call(
        _halliculator_kernel,
        out_shape=jax.ShapeDtypeStruct((pB, F), out_dtype),
        grid_spec=pltpu.PrefetchScalarGridSpec(
            num_scalar_prefetch=0,
            grid=grid,
            in_specs=[
                pl.BlockSpec((block_b, F), lambda i: (i, 0)),  # x tile
                pl.BlockSpec((block_b, F), lambda i: (i, 0)),  # noise tile
                pl.BlockSpec((F, I), lambda i: (0, 0)),        # W1 (resident)
                pl.BlockSpec((1, I), lambda i: (0, 0)),        # b1
                pl.BlockSpec((I, I), lambda i: (0, 0)),        # W2 (resident)
                pl.BlockSpec((1, I), lambda i: (0, 0)),        # b2
                pl.BlockSpec((I, F), lambda i: (0, 0)),        # W3 (resident)
                pl.BlockSpec((1, F), lambda i: (0, 0)),        # b3
            ],
            out_specs=pl.BlockSpec((block_b, F), lambda i: (i, 0)),
        ),
        compiler_params=pltpu.CompilerParams(
            dimension_semantics=("parallel",),
            vmem_limit_bytes=vmem_limit,
        ),
        cost_estimate=cost,
    )(xc, nc, w1c, b1r, w2c, b2r, w3c, b3r)

    return out_padded[:B] if pB != B else out_padded


def init_params(key, featdim, innerdim, dtype=jnp.float32):
    """Mimics PyTorch nn.Linear default init: U(-1/sqrt(fan_in), 1/sqrt(fan_in))."""
    ks = jax.random.split(key, 6)

    def lin(kw, kb, fan_in, fan_out):
        bound = 1.0 / jnp.sqrt(fan_in)
        w = jax.random.uniform(kw, (fan_in, fan_out), dtype, -bound, bound)
        b = jax.random.uniform(kb, (fan_out,), dtype, -bound, bound)
        return w, b

    w1, b1 = lin(ks[0], ks[1], featdim, innerdim)
    w2, b2 = lin(ks[2], ks[3], innerdim, innerdim)
    w3, b3 = lin(ks[4], ks[5], innerdim, featdim)
    return (w1, b1, w2, b2, w3, b3)


def reference_forward(x, noise, params, compute_dtype=jnp.bfloat16):
    """Plain-JAX reference mirroring the kernel's bf16-operand / f32-accum path."""
    w1, b1, w2, b2, w3, b3 = params
    cd = compute_dtype
    h = x.astype(cd) + noise.astype(cd)
    h = jnp.maximum(jnp.dot(h, w1.astype(cd),
                            preferred_element_type=jnp.float32) + b1, 0.0).astype(cd)
    h = jnp.maximum(jnp.dot(h, w2.astype(cd),
                            preferred_element_type=jnp.float32) + b2, 0.0).astype(cd)
    h = jnp.maximum(jnp.dot(h, w3.astype(cd),
                            preferred_element_type=jnp.float32) + b3, 0.0)
    return h.astype(x.dtype)


if __name__ == "__main__":
    # Small shapes consistent with the module (batch intentionally ragged to
    # exercise the padding path): batch=24, featdim=128, innerdim=256.
    B, FEATDIM, INNERDIM = 24, 128, 256

    key = jax.random.PRNGKey(0)
    k_x, k_noise, k_params = jax.random.split(key, 3)

    x = jax.random.normal(k_x, (B, FEATDIM), dtype=jnp.float32)
    # Gaussian noise (mean=0, std=1), matching torch.empty(...).normal_(0, 1)
    noise = jax.random.normal(k_noise, (B, FEATDIM), dtype=jnp.float32)
    params = init_params(k_params, FEATDIM, INNERDIM)

    out = halliculator_forward(x, noise, params)
    out = jax.block_until_ready(out)

    ref = reference_forward(x, noise, params)
    assert out.shape == (B, FEATDIM)
    max_err = float(jnp.max(jnp.abs(out - ref)))
    assert jnp.allclose(out, ref, atol=2e-2, rtol=2e-2), \
        f"mismatch vs JAX reference (max abs err {max_err})"

    print("KERNEL_OK")
</pallas_src>

<mosaic_0001>
module attributes {stable_mosaic.version = 11 : i64} {
  func.func @_halliculator_kernel(%arg0: i32, %arg1: memref<16x128xbf16, #tpu.memory_space<vmem>>, %arg2: memref<16x128xbf16, #tpu.memory_space<vmem>>, %arg3: memref<128x256xbf16, #tpu.memory_space<vmem>>, %arg4: memref<1x256xf32, #tpu.memory_space<vmem>>, %arg5: memref<256x256xbf16, #tpu.memory_space<vmem>>, %arg6: memref<1x256xf32, #tpu.memory_space<vmem>>, %arg7: memref<256x128xbf16, #tpu.memory_space<vmem>>, %arg8: memref<1x128xf32, #tpu.memory_space<vmem>>, %arg9: memref<16x128xf32, #tpu.memory_space<vmem>>) attributes {dimension_semantics = [#tpu.dimension_semantics<parallel>], iteration_bounds = array<i64: 2>, scalar_prefetch = 0 : i64, scratch_operands = 0 : i64, tpu.core_type = #tpu.core_type<tc>, window_params = [{transform_indices = @transform_0, window_bounds = array<i64: 16, 128>}, {transform_indices = @transform_1, window_bounds = array<i64: 16, 128>}, {pipeline_mode = #tpu.pipeline_mode<synchronous>, transform_indices = @transform_2, window_bounds = array<i64: 128, 256>}, {pipeline_mode = #tpu.pipeline_mode<synchronous>, transform_indices = @transform_3, window_bounds = array<i64: 1, 256>}, {pipeline_mode = #tpu.pipeline_mode<synchronous>, transform_indices = @transform_4, window_bounds = array<i64: 256, 256>}, {pipeline_mode = #tpu.pipeline_mode<synchronous>, transform_indices = @transform_5, window_bounds = array<i64: 1, 256>}, {pipeline_mode = #tpu.pipeline_mode<synchronous>, transform_indices = @transform_6, window_bounds = array<i64: 256, 128>}, {pipeline_mode = #tpu.pipeline_mode<synchronous>, transform_indices = @transform_7, window_bounds = array<i64: 1, 128>}, {transform_indices = @transform_8, window_bounds = array<i64: 16, 128>}]} {
    %c0 = arith.constant 0 : index
    %c0_0 = arith.constant 0 : index
    %0 = vector.load %arg1[%c0, %c0_0] : memref<16x128xbf16, #tpu.memory_space<vmem>>, vector<16x128xbf16>
    %c0_1 = arith.constant 0 : index
    %c0_2 = arith.constant 0 : index
    %1 = vector.load %arg2[%c0_1, %c0_2] : memref<16x128xbf16, #tpu.memory_space<vmem>>, vector<16x128xbf16>
    %2 = arith.addf %0, %1 : vector<16x128xbf16>
    %c0_3 = arith.constant 0 : index
    %c0_4 = arith.constant 0 : index
    %3 = vector.load %arg3[%c0_3, %c0_4] : memref<128x256xbf16, #tpu.memory_space<vmem>>, vector<128x256xbf16>
    %cst = arith.constant dense<0.000000e+00> : vector<16x256xf32>
    %4 = tpu.matmul %2, %3, %cst {dimension_numbers = #tpu.dot_dimension_numbers<[1], [0], [0], [1], [0, 0, 1, 1], [], []>} : vector<16x128xbf16>, vector<128x256xbf16>, vector<16x256xf32> -> vector<16x256xf32>
    %c0_5 = arith.constant 0 : index
    %c0_6 = arith.constant 0 : index
    %5 = vector.load %arg4[%c0_5, %c0_6] : memref<1x256xf32, #tpu.memory_space<vmem>>, vector<1x256xf32>
    %6 = vector.broadcast %5 : vector<1x256xf32> to vector<16x256xf32>
    %7 = arith.addf %4, %6 : vector<16x256xf32>
    %cst_7 = arith.constant 0.000000e+00 : f32
    %8 = vector.broadcast %cst_7 : f32 to vector<16x256xf32>
    %9 = arith.maximumf %7, %8 : vector<16x256xf32>
    %10 = arith.truncf %9 : vector<16x256xf32> to vector<16x256xbf16>
    %c0_8 = arith.constant 0 : index
    %c0_9 = arith.constant 0 : index
    %11 = vector.load %arg5[%c0_8, %c0_9] : memref<256x256xbf16, #tpu.memory_space<vmem>>, vector<256x256xbf16>
    %cst_10 = arith.constant dense<0.000000e+00> : vector<16x256xf32>
    %12 = tpu.matmul %10, %11, %cst_10 {dimension_numbers = #tpu.dot_dimension_numbers<[1], [0], [0], [1], [0, 0, 1, 1], [], []>} : vector<16x256xbf16>, vector<256x256xbf16>, vector<16x256xf32> -> vector<16x256xf32>
    %c0_11 = arith.constant 0 : index
    %c0_12 = arith.constant 0 : index
    %13 = vector.load %arg6[%c0_11, %c0_12] : memref<1x256xf32, #tpu.memory_space<vmem>>, vector<1x256xf32>
    %14 = vector.broadcast %13 : vector<1x256xf32> to vector<16x256xf32>
    %15 = arith.addf %12, %14 : vector<16x256xf32>
    %cst_13 = arith.constant 0.000000e+00 : f32
    %16 = vector.broadcast %cst_13 : f32 to vector<16x256xf32>
    %17 = arith.maximumf %15, %16 : vector<16x256xf32>
    %18 = arith.truncf %17 : vector<16x256xf32> to vector<16x256xbf16>
    %c0_14 = arith.constant 0 : index
    %c0_15 = arith.constant 0 : index
    %19 = vector.load %arg7[%c0_14, %c0_15] : memref<256x128xbf16, #tpu.memory_space<vmem>>, vector<256x128xbf16>
    %cst_16 = arith.constant dense<0.000000e+00> : vector<16x128xf32>
    %20 = tpu.matmul %18, %19, %cst_16 {dimension_numbers = #tpu.dot_dimension_numbers<[1], [0], [0], [1], [0, 0, 1, 1], [], []>} : vector<16x256xbf16>, vector<256x128xbf16>, vector<16x128xf32> -> vector<16x128xf32>
    %c0_17 = arith.constant 0 : index
    %c0_18 = arith.constant 0 : index
    %21 = vector.load %arg8[%c0_17, %c0_18] : memref<1x128xf32, #tpu.memory_space<vmem>>, vector<1x128xf32>
    %22 = vector.broadcast %21 : vector<1x128xf32> to vector<16x128xf32>
    %23 = arith.addf %20, %22 : vector<16x128xf32>
    %cst_19 = arith.constant 0.000000e+00 : f32
    %24 = vector.broadcast %cst_19 : f32 to vector<16x128xf32>
    %25 = arith.maximumf %23, %24 : vector<16x128xf32>
    %c0_20 = arith.constant 0 : index
    %c0_21 = arith.constant 0 : index
    %26 = vector.load %arg9[%c0_20, %c0_21] : memref<16x128xf32, #tpu.memory_space<vmem>>, vector<16x128xf32>
    tpu.vector_store %arg9[%c0_20, %c0_21], %25 {strides = array<i32>} : memref<16x128xf32, #tpu.memory_space<vmem>>, vector<16x128xf32>,
    return
  }
  func.func @transform_0(%arg0: i32) -> (i32, i32) {
    %c0_i32 = arith.constant 0 : i32
    %c0_i32_0 = arith.constant 0 : i32
    return %arg0, %c0_i32 : i32, i32
  }
  func.func @transform_1(%arg0: i32) -> (i32, i32) {
    %c0_i32 = arith.constant 0 : i32
    %c0_i32_0 = arith.constant 0 : i32
    return %arg0, %c0_i32 : i32, i32
  }
  func.func @transform_2(%arg0: i32) -> (i32, i32) {
    %c0_i32 = arith.constant 0 : i32
    %c0_i32_0 = arith.constant 0 : i32
    %c0_i32_1 = arith.constant 0 : i32
    return %c0_i32, %c0_i32_0 : i32, i32
  }
  func.func @transform_3(%arg0: i32) -> (i32, i32) {
    %c0_i32 = arith.constant 0 : i32
    %c0_i32_0 = arith.constant 0 : i32
    %c0_i32_1 = arith.constant 0 : i32
    return %c0_i32, %c0_i32_0 : i32, i32
  }
  func.func @transform_4(%arg0: i32) -> (i32, i32) {
    %c0_i32 = arith.constant 0 : i32
    %c0_i32_0 = arith.constant 0 : i32
    %c0_i32_1 = arith.constant 0 : i32
    return %c0_i32, %c0_i32_0 : i32, i32
  }
  func.func @transform_5(%arg0: i32) -> (i32, i32) {
    %c0_i32 = arith.constant 0 : i32
    %c0_i32_0 = arith.constant 0 : i32
    %c0_i32_1 = arith.constant 0 : i32
    return %c0_i32, %c0_i32_0 : i32, i32
  }
  func.func @transform_6(%arg0: i32) -> (i32, i32) {
    %c0_i32 = arith.constant 0 : i32
    %c0_i32_0 = arith.constant 0 : i32
    %c0_i32_1 = arith.constant 0 : i32
    return %c0_i32, %c0_i32_0 : i32, i32
  }
  func.func @transform_7(%arg0: i32) -> (i32, i32) {
    %c0_i32 = arith.constant 0 : i32
    %c0_i32_0 = arith.constant 0 : i32
    %c0_i32_1 = arith.constant 0 : i32
    return %c0_i32, %c0_i32_0 : i32, i32
  }
  func.func @transform_8(%arg0: i32) -> (i32, i32) {
    %c0_i32 = arith.constant 0 : i32
    %c0_i32_0 = arith.constant 0 : i32
    return %arg0, %c0_i32 : i32, i32
  }
}

</mosaic_0001>

<llo_original>
// kernel: halliculator_forward.1
$region0: #{halliculator_forward.1}
  #allocation0 [shape = 'u32[]', space=smem, size = 0x4, offset = 0x4, fixed_abs, tag = 'smem constant byte address 0x4 - core index']
  #allocation1 [shape = 'u32[72,128]{1,0:T(1,128)}', space=vmem, size = 0x9000, scoped, tag = 'internal scratch']
  %s0 = inlined_call_operand.vmem [shape: bf16[32,128], index: 0, kind: input, shape index: {}]
  %s1 = inlined_call_operand.vmem [shape: bf16[32,128], index: 1, kind: input, shape index: {}]
  %s2 = inlined_call_operand.vmem [shape: bf16[128,256], index: 2, kind: input, shape index: {}]
  %s3 = inlined_call_operand.vmem [shape: f32[1,256], index: 3, kind: input, shape index: {}]
  %s4 = inlined_call_operand.vmem [shape: bf16[256,256], index: 4, kind: input, shape index: {}]
  %s5 = inlined_call_operand.vmem [shape: f32[1,256], index: 5, kind: input, shape index: {}]
  %s6 = inlined_call_operand.vmem [shape: bf16[256,128], index: 6, kind: input, shape index: {}]
  %s7 = inlined_call_operand.vmem [shape: f32[1,128], index: 7, kind: input, shape index: {}]
  %s8 = inlined_call_operand.vmem [shape: f32[32,128], index: 8, kind: output, shape index: {}]
  %s9 = sld [smem:[#allocation0]]
  $region65: #{halliculator_forward.1} parent=0
    _
  %s11 = ssub.s32 1, %s9
  %s12 = scalar_select 0, %s11, %s9
  loop: start=0, step=1, limit=4
  $region2: #{halliculator_forward.1} parent=0 // loop_pre_header
    _
  $region3: #{halliculator_forward.1} parent=0 // loop_header
    %s14 = sphi 0, %s18
    %p15 = scmp.ge.s32.totalorder %s14, 4
    %s24 = sphi 0, %s26
    %s27 = sphi 0, %s24
    %s28 = sphi 0, %s27
    %s44 = sphi 0, %s28
    %s50 = sphi 0, %s52
    %s53 = sphi 0, %s50
    %s54 = sphi 0, %s53
    %s70 = sphi 0, %s54
    %s74 = sphi 0, %s74
    %s76 = sphi 0, %s74
    %s77 = sphi 0, %s76
    %s91 = sphi 0, %s77
    %s95 = sphi 0, %s95
    %s97 = sphi 0, %s95
    %s98 = sphi 0, %s97
    %s112 = sphi 0, %s98
    %s116 = sphi 0, %s116
    %s118 = sphi 0, %s116
    %s119 = sphi 0, %s118
    %s133 = sphi 0, %s119
    %s137 = sphi 0, %s137
    %s139 = sphi 0, %s137
    %s140 = sphi 0, %s139
    %s154 = sphi 0, %s140
    %s158 = sphi 0, %s158
    %s160 = sphi 0, %s158
    %s161 = sphi 0, %s160
    %s175 = sphi 0, %s161
    %s179 = sphi 0, %s179
    %s181 = sphi 0, %s179
    %s182 = sphi 0, %s181
    %s196 = sphi 0, %s182
    %s202 = sphi 0, %s204
    %s205 = sphi 0, %s202
    %s206 = sphi 0, %s205
    %s222 = sphi 0, %s206
  $region4: #{halliculator_forward.1} parent=0 // loop_header_branch
    %17 = sbr.rel (%p15) target = $region8
  $region5: #{halliculator_forward.1} parent=0 // loop_body
    %s19 = ssub.s32 %s14, 1
    %s20 = ssub.s32 %s14, 2
    %s21 = sadd.s32 %s14, 1
    %s22 = ssub.s32 %s14, %s21
    %p23 = scmp.eq.s32.totalorder %s22, 0
    %s25 = sadd.s32 %s24, 1
    %s26 = scalar_select %p23, %s24, %s25
    %p29 = pneg %p23
    %p30 = scmp.eq.s32.totalorder %s14, 1
    %p31 = por %p29, %p30
    %p32 = scmp.ne.s32.totalorder %s24, %s27
    %p33 = scmp.eq.s32.totalorder %s14, 0
    %p34 = por %p32, %p33
    %p35 = scmp.ne.s32.totalorder %s24, %s27
    %p36 = scmp.eq.s32.totalorder %s19, 1
    %p37 = por %p35, %p36
    %p38 = scmp.ne.s32.totalorder %s27, %s28
    %p39 = scmp.eq.s32.totalorder %s19, 0
    %p40 = por %p38, %p39
    %p41 = scmp.ne.s32.totalorder %s27, %s28
    %p42 = scmp.eq.s32.totalorder %s20, 1
    %p43 = por %p41, %p42
    %p45 = scmp.ne.s32.totalorder %s28, %s44
    %p46 = scmp.eq.s32.totalorder %s20, 0
    %p47 = por %p45, %p46
    %s48 = ssub.s32 %s14, %s21
    %p49 = scmp.eq.s32.totalorder %s48, 0
    %s51 = sadd.s32 %s50, 1
    %s52 = scalar_select %p49, %s50, %s51
    %p55 = pneg %p49
    %p56 = scmp.eq.s32.totalorder %s14, 1
    %p57 = por %p55, %p56
    %p58 = scmp.ne.s32.totalorder %s50, %s53
    %p59 = scmp.eq.s32.totalorder %s14, 0
    %p60 = por %p58, %p59
    %p61 = scmp.ne.s32.totalorder %s50, %s53
    %p62 = scmp.eq.s32.totalorder %s19, 1
    %p63 = por %p61, %p62
    %p64 = scmp.ne.s32.totalorder %s53, %s54
    %p65 = scmp.eq.s32.totalorder %s19, 0
    %p66 = por %p64, %p65
    %p67 = scmp.ne.s32.totalorder %s53, %s54
    %p68 = scmp.eq.s32.totalorder %s20, 1
    %p69 = por %p67, %p68
    %p71 = scmp.ne.s32.totalorder %s54, %s70
    %p72 = scmp.eq.s32.totalorder %s20, 0
    %p73 = por %p71, %p72
    %s75 = sadd.s32 %s74, 1
    %p78 = scmp.eq.s32.totalorder %s14, 1
    %p79 = scmp.ne.s32.totalorder %s74, %s76
    %p80 = scmp.eq.s32.totalorder %s14, 0
    %p81 = por %p79, %p80
    %p82 = scmp.ne.s32.totalorder %s74, %s76
    %p83 = scmp.eq.s32.totalorder %s19, 1
    %p84 = por %p82, %p83
    %p85 = scmp.ne.s32.totalorder %s76, %s77
    %p86 = scmp.eq.s32.totalorder %s19, 0
    %p87 = por %p85, %p86
    %p88 = scmp.ne.s32.totalorder %s76, %s77
    %p89 = scmp.eq.s32.totalorder %s20, 1
    %p90 = por %p88, %p89
    %p92 = scmp.ne.s32.totalorder %s77, %s91
    %p93 = scmp.eq.s32.totalorder %s20, 0
    %p94 = por %p92, %p93
    %s96 = sadd.s32 %s95, 1
    %p99 = scmp.eq.s32.totalorder %s14, 1
    %p100 = scmp.ne.s32.totalorder %s95, %s97
    %p101 = scmp.eq.s32.totalorder %s14, 0
    %p102 = por %p100, %p101
    %p103 = scmp.ne.s32.totalorder %s95, %s97
    %p104 = scmp.eq.s32.totalorder %s19, 1
    %p105 = por %p103, %p104
    %p106 = scmp.ne.s32.totalorder %s97, %s98
    %p107 = scmp.eq.s32.totalorder %s19, 0
    %p108 = por %p106, %p107
    %p109 = scmp.ne.s32.totalorder %s97, %s98
    %p110 = scmp.eq.s32.totalorder %s20, 1
    %p111 = por %p109, %p110
    %p113 = scmp.ne.s32.totalorder %s98, %s112
    %p114 = scmp.eq.s32.totalorder %s20, 0
    %p115 = por %p113, %p114
    %s117 = sadd.s32 %s116, 1
    %p120 = scmp.eq.s32.totalorder %s14, 1
    %p121 = scmp.ne.s32.totalorder %s116, %s118
    %p122 = scmp.eq.s32.totalorder %s14, 0
    %p123 = por %p121, %p122
    %p124 = scmp.ne.s32.totalorder %s116, %s118
    %p125 = scmp.eq.s32.totalorder %s19, 1
    %p126 = por %p124, %p125
    %p127 = scmp.ne.s32.totalorder %s118, %s119
    %p128 = scmp.eq.s32.totalorder %s19, 0
    %p129 = por %p127, %p128
    %p130 = scmp.ne.s32.totalorder %s118, %s119
    %p131 = scmp.eq.s32.totalorder %s20, 1
    %p132 = por %p130, %p131
    %p134 = scmp.ne.s32.totalorder %s119, %s133
    %p135 = scmp.eq.s32.totalorder %s20, 0
    %p136 = por %p134, %p135
    %s138 = sadd.s32 %s137, 1
    %p141 = scmp.eq.s32.totalorder %s14, 1
    %p142 = scmp.ne.s32.totalorder %s137, %s139
    %p143 = scmp.eq.s32.totalorder %s14, 0
    %p144 = por %p142, %p143
    %p145 = scmp.ne.s32.totalorder %s137, %s139
    %p146 = scmp.eq.s32.totalorder %s19, 1
    %p147 = por %p145, %p146
    %p148 = scmp.ne.s32.totalorder %s139, %s140
    %p149 = scmp.eq.s32.totalorder %s19, 0
    %p150 = por %p148, %p149
    %p151 = scmp.ne.s32.totalorder %s139, %s140
    %p152 = scmp.eq.s32.totalorder %s20, 1
    %p153 = por %p151, %p152
    %p155 = scmp.ne.s32.totalorder %s140, %s154
    %p156 = scmp.eq.s32.totalorder %s20, 0
    %p157 = por %p155, %p156
    %s159 = sadd.s32 %s158, 1
    %p162 = scmp.eq.s32.totalorder %s14, 1
    %p163 = scmp.ne.s32.totalorder %s158, %s160
    %p164 = scmp.eq.s32.totalorder %s14, 0
    %p165 = por %p163, %p164
    %p166 = scmp.ne.s32.totalorder %s158, %s160
    %p167 = scmp.eq.s32.totalorder %s19, 1
    %p168 = por %p166, %p167
    %p169 = scmp.ne.s32.totalorder %s160, %s161
    %p170 = scmp.eq.s32.totalorder %s19, 0
    %p171 = por %p169, %p170
    %p172 = scmp.ne.s32.totalorder %s160, %s161
    %p173 = scmp.eq.s32.totalorder %s20, 1
    %p174 = por %p172, %p173
    %p176 = scmp.ne.s32.totalorder %s161, %s175
    %p177 = scmp.eq.s32.totalorder %s20, 0
    %p178 = por %p176, %p177
    %s180 = sadd.s32 %s179, 1
    %p183 = scmp.eq.s32.totalorder %s14, 1
    %p184 = scmp.ne.s32.totalorder %s179, %s181
    %p185 = scmp.eq.s32.totalorder %s14, 0
    %p186 = por %p184, %p185
    %p187 = scmp.ne.s32.totalorder %s179, %s181
    %p188 = scmp.eq.s32.totalorder %s19, 1
    %p189 = por %p187, %p188
    %p190 = scmp.ne.s32.totalorder %s181, %s182
    %p191 = scmp.eq.s32.totalorder %s19, 0
    %p192 = por %p190, %p191
    %p193 = scmp.ne.s32.totalorder %s181, %s182
    %p194 = scmp.eq.s32.totalorder %s20, 1
    %p195 = por %p193, %p194
    %p197 = scmp.ne.s32.totalorder %s182, %s196
    %p198 = scmp.eq.s32.totalorder %s20, 0
    %p199 = por %p197, %p198
    %s200 = ssub.s32 %s14, %s21
    %p201 = scmp.eq.s32.totalorder %s200, 0
    %s203 = sadd.s32 %s202, 1
    %s204 = scalar_select %p201, %s202, %s203
    %p207 = pneg %p201
    %p208 = scmp.eq.s32.totalorder %s14, 1
    %p209 = por %p207, %p208
    %p210 = scmp.ne.s32.totalorder %s202, %s205
    %p211 = scmp.eq.s32.totalorder %s14, 0
    %p212 = por %p210, %p211
    %p213 = scmp.ne.s32.totalorder %s202, %s205
    %p214 = scmp.eq.s32.totalorder %s19, 1
    %p215 = por %p213, %p214
    %p216 = scmp.ne.s32.totalorder %s205, %s206
    %p217 = scmp.eq.s32.totalorder %s19, 0
    %p218 = por %p216, %p217
    %p219 = scmp.ne.s32.totalorder %s205, %s206
    %p220 = scmp.eq.s32.totalorder %s20, 1
    %p221 = por %p219, %p220
    %p223 = scmp.ne.s32.totalorder %s206, %s222
    %p224 = scmp.eq.s32.totalorder %s20, 0
    %p225 = por %p223, %p224
    %p226 = scmp.le.s32.totalorder 1, %s14
    %p227 = scmp.lt.s32.totalorder %s14, 3
    %p228 = pnand %p226, %p227
    %p229 = pneg %p228
    // Predicated region
    $region9: #{halliculator_forward.1} parent=5 // pred_check
      _
    $region10: #{halliculator_forward.1} parent=5 // pred_check_branch
      %231 = sbr.rel (%p228) target = $region12
    $region11: #{halliculator_forward.1} parent=5 // pred_region
      %s232 = ssub.s32 %s14, 1
      // Predicated region
      $region13: #{halliculator_forward.1} parent=11 // pred_check
        %p233 = pneg %p87
      $region14: #{halliculator_forward.1} parent=11 // pred_check_branch
        %235 = sbr.rel (%p233) target = $region16
      $region15: #{halliculator_forward.1} parent=11 // pred_region
        _
      $region16: #{halliculator_forward.1} parent=11 // pred_fallthru
        _
      // Predicated region
      $region17: #{halliculator_forward.1} parent=11 // pred_check
        %p236 = pneg %p108
      $region18: #{halliculator_forward.1} parent=11 // pred_check_branch
        %238 = sbr.rel (%p236) target = $region20
      $region19: #{halliculator_forward.1} parent=11 // pred_region
        _
      $region20: #{halliculator_forward.1} parent=11 // pred_fallthru
        _
      // Predicated region
      $region21: #{halliculator_forward.1} parent=11 // pred_check
        %p239 = pneg %p129
      $region22: #{halliculator_forward.1} parent=11 // pred_check_branch
        %241 = sbr.rel (%p239) target = $region24
      $region23: #{halliculator_forward.1} parent=11 // pred_region
        _
      $region24: #{halliculator_forward.1} parent=11 // pred_fallthru
        _
      // Predicated region
      $region25: #{halliculator_forward.1} parent=11 // pred_check
        %p242 = pneg %p150
      $region26: #{halliculator_forward.1} parent=11 // pred_check_branch
        %244 = sbr.rel (%p242) target = $region28
      $region27: #{halliculator_forward.1} parent=11 // pred_region
        _
      $region28: #{halliculator_forward.1} parent=11 // pred_fallthru
        _
      // Predicated region
      $region29: #{halliculator_forward.1} parent=11 // pred_check
        %p245 = pneg %p171
      $region30: #{halliculator_forward.1} parent=11 // pred_check_branch
        %247 = sbr.rel (%p245) target = $region32
      $region31: #{halliculator_forward.1} parent=11 // pred_region
        _
      $region32: #{halliculator_forward.1} parent=11 // pred_fallthru
        _
      // Predicated region
      $region33: #{halliculator_forward.1} parent=11 // pred_check
        %p248 = pneg %p192
      $region34: #{halliculator_forward.1} parent=11 // pred_check_branch
        %250 = sbr.rel (%p248) target = $region36
      $region35: #{halliculator_forward.1} parent=11 // pred_region
        _
      $region36: #{halliculator_forward.1} parent=11 // pred_fallthru
        _
    $region12: #{halliculator_forward.1} parent=5 // pred_fallthru
      _
    %p251 = scmp.lt.s32.totalorder %s14, 2
    // Predicated region
    $region37: #{halliculator_forward.1} parent=5 // pred_check
      %p252 = pneg %p251
    $region38: #{halliculator_forward.1} parent=5 // pred_check_branch
      %254 = sbr.rel (%p252) target = $region40
    $region39: #{halliculator_forward.1} parent=5 // pred_region
      // Predicated region
      $region41: #{halliculator_forward.1} parent=39 // pred_check
        %p255 = pneg %p34
      $region42: #{halliculator_forward.1} parent=39 // pred_check_branch
        %257 = sbr.rel (%p255) target = $region44
      $region43: #{halliculator_forward.1} parent=39 // pred_region
        %s258 = smul.u32 2, %s14
        %p259 = scmp.lt.s32.totalorder %s258, 3
        %s260 = scalar_select %p259, %s258, 3
        %s261 = smul.addr %s260, 4
        %s262 = scalar_lea.vmem %s0, %s261
        %s263 = smul.u32 2, %s14
      $region44: #{halliculator_forward.1} parent=39 // pred_fallthru
        _
      // Predicated region
      $region45: #{halliculator_forward.1} parent=39 // pred_check
        %p264 = pneg %p60
      $region46: #{halliculator_forward.1} parent=39 // pred_check_branch
        %266 = sbr.rel (%p264) target = $region48
      $region47: #{halliculator_forward.1} parent=39 // pred_region
        %s267 = smul.u32 2, %s14
        %p268 = scmp.lt.s32.totalorder %s267, 3
        %s269 = scalar_select %p268, %s267, 3
        %s270 = smul.addr %s269, 4
        %s271 = scalar_lea.vmem %s1, %s270
        %s272 = smul.u32 2, %s14
      $region48: #{halliculator_forward.1} parent=39 // pred_fallthru
        _
    $region40: #{halliculator_forward.1} parent=5 // pred_fallthru
      _
    %p273 = scmp.le.s32.totalorder 1, %s14
    %p274 = scmp.lt.s32.totalorder %s14, 3
    %p275 = pnand %p273, %p274
    %p276 = pneg %p275
    // Predicated region
    $region49: #{halliculator_forward.1} parent=5 // pred_check
      _
    $region50: #{halliculator_forward.1} parent=5 // pred_check_branch
      %278 = sbr.rel (%p275) target = $region52
    $region51: #{halliculator_forward.1} parent=5 // pred_region
      %s279 = ssub.s32 %s14, 1
      %s280 = smul.u32 2, %s19
      %p281 = scmp.lt.s32.totalorder %s280, 3
      %s282 = scalar_select %p281, %s280, 3
      %s283 = smul.addr %s282, 4
      %s284 = scalar_lea.vmem %s0, %s283
      %p285 = pneg %p40
      %p286 = pneg %p37
      %s287 = smul.u32 2, %s19
      %p288 = scmp.lt.s32.totalorder %s287, 3
      %s289 = scalar_select %p288, %s287, 3
      %s290 = smul.addr %s289, 4
      %s291 = scalar_lea.vmem %s1, %s290
      %p292 = pneg %p66
      %p293 = pneg %p63
      %p294 = pneg %p87
      %p295 = pneg %p84
      %p296 = pneg %p108
      %p297 = pneg %p105
      %p298 = pneg %p129
      %p299 = pneg %p126
      %p300 = pneg %p150
      %p301 = pneg %p147
      %p302 = pneg %p171
      %p303 = pneg %p168
      %p304 = pneg %p192
      %p305 = pneg %p189
      %p306 = pneg %p218
      %p307 = pneg %p215
      %s308 = smul.u32 2, %s19
      %p309 = scmp.lt.s32.totalorder %s308, 3
      %s310 = scalar_select %p309, %s308, 3
      %s311 = smul.addr %s310, 8
      %s312 = scalar_lea.vmem %s8, %s311
      %s313 = smul.u32 2, %s19
      %p314 = scmp.lt.s32.totalorder %s313, 3
      %s315 = scalar_select %p314, %s313, 3
      %s316 = smul.addr %s315, 4
      %s317 = scalar_lea.vmem %s0, %s316
      %s318 = smul.u32 2, %s19
      %s319 = smul.u32 2, %s19
      %p320 = scmp.lt.s32.totalorder %s319, 3
      %s321 = scalar_select %p320, %s319, 3
      %s322 = smul.addr %s321, 4
      %s323 = scalar_lea.vmem %s1, %s322
      %s324 = smul.u32 2, %s19
      %s325 = smul.u32 2, %s19
      %p326 = scmp.lt.s32.totalorder %s325, 3
      %s327 = scalar_select %p326, %s325, 3
      %s328 = smul.addr %s327, 8
      %s329 = scalar_lea.vmem %s8, %s328
      %s330 = smul.u32 2, %s19
      %v331 = vld [vmem:[%s317] sm:$0xf]
      %v332 = vld [vmem:[%s317 + $0x4] sm:$0xf]
      %v333 = vld [vmem:[%s323] sm:$0xf]
      %v334 = vld [vmem:[%s323 + $0x4] sm:$0xf]
      %v335 = vunpack.c.l.bf16 %v331
      %v336 = vunpack.c.l.bf16 %v332
      %v337 = vunpack.c.l.bf16 %v333
      %v338 = vunpack.c.l.bf16 %v334
      %v339 = vadd.f32 %v335, %v337
      %v340 = vadd.f32 %v336, %v338
      %v341 = vpack.c.bf16 %v340, %v339
      %v342 = vld [vmem:[%s2] sm:$0xff]
      %v343 = vld [vmem:[%s2 + $0x8] sm:$0xff]
      %v344 = vld [vmem:[%s2 + $0x10] sm:$0xff]
      %v345 = vld [vmem:[%s2 + $0x18] sm:$0xff]
      %v346 = vld [vmem:[%s2 + $0x20] sm:$0xff]
      %v347 = vld [vmem:[%s2 + $0x28] sm:$0xff]
      %v348 = vld [vmem:[%s2 + $0x30] sm:$0xff]
      %v349 = vld [vmem:[%s2 + $0x38] sm:$0xff]
      %v350 = vld [vmem:[%s2 + $0x40] sm:$0xff]
      %v351 = vld [vmem:[%s2 + $0x48] sm:$0xff]
      %v352 = vld [vmem:[%s2 + $0x50] sm:$0xff]
      %v353 = vld [vmem:[%s2 + $0x58] sm:$0xff]
      %v354 = vld [vmem:[%s2 + $0x60] sm:$0xff]
      %v355 = vld [vmem:[%s2 + $0x68] sm:$0xff]
      %v356 = vld [vmem:[%s2 + $0x70] sm:$0xff]
      %v357 = vld [vmem:[%s2 + $0x78] sm:$0xff]
      %v358 = vld [vmem:[%s3] sm:$0x3]
      %v360 = vperm.slane %v358, 0
      %v361 = vperm.slane %v358, 1
      %v380 = vunpack.c.l.b16 %v342
      %v381 = vunpack.c.h.b16 %v342
      %v382 = vunpack.c.l.b16 %v343
      %v383 = vunpack.c.h.b16 %v343
      %v384 = vunpack.c.l.b16 %v344
      %v385 = vunpack.c.h.b16 %v344
      %v386 = vunpack.c.l.b16 %v345
      %v387 = vunpack.c.h.b16 %v345
      %v388 = vunpack.c.l.b16 %v346
      %v389 = vunpack.c.h.b16 %v346
      %v390 = vunpack.c.l.b16 %v347
      %v391 = vunpack.c.h.b16 %v347
      %v392 = vunpack.c.l.b16 %v348
      %v393 = vunpack.c.h.b16 %v348
      %v394 = vunpack.c.l.b16 %v349
      %v395 = vunpack.c.h.b16 %v349
      %v396 = vunpack.c.l.b16 %v350
      %v397 = vunpack.c.h.b16 %v350
      %v398 = vunpack.c.l.b16 %v351
      %v399 = vunpack.c.h.b16 %v351
      %v400 = vunpack.c.l.b16 %v352
      %v401 = vunpack.c.h.b16 %v352
      %v402 = vunpack.c.l.b16 %v353
      %v403 = vunpack.c.h.b16 %v353
      %v404 = vunpack.c.l.b16 %v354
      %v405 = vunpack.c.h.b16 %v354
      %v406 = vunpack.c.l.b16 %v355
      %v407 = vunpack.c.h.b16 %v355
      %v408 = vunpack.c.l.b16 %v356
      %v409 = vunpack.c.h.b16 %v356
      %v410 = vunpack.c.l.b16 %v357
      %v411 = vunpack.c.h.b16 %v357
      %v412 = vpack.c.b16 %v382, %v380
      %v413 = vpack.c.b16 %v383, %v381
      %v414 = vpack.c.b16 %v386, %v384
      %v415 = vpack.c.b16 %v387, %v385
      %v416 = vpack.c.b16 %v390, %v388
      %v417 = vpack.c.b16 %v391, %v389
      %v418 = vpack.c.b16 %v394, %v392
      %v419 = vpack.c.b16 %v395, %v393
      %v420 = vpack.c.b16 %v398, %v396
      %v421 = vpack.c.b16 %v399, %v397
      %v422 = vpack.c.b16 %v402, %v400
      %v423 = vpack.c.b16 %v403, %v401
      %v424 = vpack.c.b16 %v406, %v404
      %v425 = vpack.c.b16 %v407, %v405
      %v426 = vpack.c.b16 %v410, %v408
      %v427 = vpack.c.b16 %v411, %v409
      %444 = vmatpush.bf16.msra.mxu0 %v426
      %445 = vmatpush.bf16.msra.mxu0 %v424
      %446 = vmatpush.bf16.msra.mxu0 %v422
      %447 = vmatpush.bf16.msra.mxu0 %v420
      %448 = vmatpush.bf16.msra.mxu0 %v418
      %449 = vmatpush.bf16.msra.mxu0 %v416
      %450 = vmatpush.bf16.msra.mxu0 %v414
      %451 = vmatpush.bf16.msra.mxu0 %v412
      %452 = vmatmul.bf16.gmra.mxu0 %v341
      %v453 = vpop.f32.mrf.mxu0
      %v454 = vadd.f32 %v360, %v453
      %v455 = vpop.f32.mrf.mxu0
      %v456 = vadd.f32 %v360, %v455
      %457 = vdwg.mxu0
      %458 = vmatpush.bf16.msra.mxu0 %v427
      %459 = vmatpush.bf16.msra.mxu0 %v425
      %460 = vmatpush.bf16.msra.mxu0 %v423
      %461 = vmatpush.bf16.msra.mxu0 %v421
      %462 = vmatpush.bf16.msra.mxu0 %v419
      %463 = vmatpush.bf16.msra.mxu0 %v417
      %464 = vmatpush.bf16.msra.mxu0 %v415
      %465 = vmatpush.bf16.msra.mxu0 %v413
      %466 = vmatmul.bf16.gmra.mxu0 %v341
      %v467 = vpop.f32.mrf.mxu0
      %v468 = vadd.f32 %v361, %v467
      %v469 = vpop.f32.mrf.mxu0
      %v470 = vadd.f32 %v361, %v469
      %471 = vdwg.mxu0
      %v472 = vmax.f32 %v454, 0.0
      %v473 = vmax.f32 %v468, 0.0
      %v474 = vmax.f32 %v456, 0.0
      %v475 = vmax.f32 %v470, 0.0
      %v476 = vpack.c.bf16 %v474, %v472
      %v477 = vpack.c.bf16 %v475, %v473
      %v478 = vld [vmem:[%s4] sm:$0xff]
      %v479 = vld [vmem:[%s4 + $0x8] sm:$0xff]
      %v480 = vld [vmem:[%s4 + $0x10] sm:$0xff]
      %v481 = vld [vmem:[%s4 + $0x18] sm:$0xff]
      %v482 = vld [vmem:[%s4 + $0x20] sm:$0xff]
      %v483 = vld [vmem:[%s4 + $0x28] sm:$0xff]
      %v484 = vld [vmem:[%s4 + $0x30] sm:$0xff]
      %v485 = vld [vmem:[%s4 + $0x38] sm:$0xff]
      %v486 = vld [vmem:[%s4 + $0x40] sm:$0xff]
      %v487 = vld [vmem:[%s4 + $0x48] sm:$0xff]
      %v488 = vld [vmem:[%s4 + $0x50] sm:$0xff]
      %v489 = vld [vmem:[%s4 + $0x58] sm:$0xff]
      %v490 = vld [vmem:[%s4 + $0x60] sm:$0xff]
      %v491 = vld [vmem:[%s4 + $0x68] sm:$0xff]
      %v492 = vld [vmem:[%s4 + $0x70] sm:$0xff]
      %v493 = vld [vmem:[%s4 + $0x78] sm:$0xff]
      %v494 = vld [vmem:[%s4 + $0x80] sm:$0xff]
      %v495 = vld [vmem:[%s4 + $0x88] sm:$0xff]
      %v496 = vld [vmem:[%s4 + $0x90] sm:$0xff]
      %v497 = vld [vmem:[%s4 + $0x98] sm:$0xff]
      %v498 = vld [vmem:[%s4 + $0xa0] sm:$0xff]
      %v499 = vld [vmem:[%s4 + $0xa8] sm:$0xff]
      %v500 = vld [vmem:[%s4 + $0xb0] sm:$0xff]
      %v501 = vld [vmem:[%s4 + $0xb8] sm:$0xff]
      %v502 = vld [vmem:[%s4 + $0xc0] sm:$0xff]
      %v503 = vld [vmem:[%s4 + $0xc8] sm:$0xff]
      %v504 = vld [vmem:[%s4 + $0xd0] sm:$0xff]
      %v505 = vld [vmem:[%s4 + $0xd8] sm:$0xff]
      %v506 = vld [vmem:[%s4 + $0xe0] sm:$0xff]
      %v507 = vld [vmem:[%s4 + $0xe8] sm:$0xff]
      %v508 = vld [vmem:[%s4 + $0xf0] sm:$0xff]
      %v509 = vld [vmem:[%s4 + $0xf8] sm:$0xff]
      %v510 = vld [vmem:[%s5] sm:$0x3]
      %v512 = vperm.slane %v510, 0
      %v513 = vperm.slane %v510, 1
      %v548 = vunpack.c.l.b16 %v478
      %v549 = vunpack.c.h.b16 %v478
      %v550 = vunpack.c.l.b16 %v479
      %v551 = vunpack.c.h.b16 %v479
      %v552 = vunpack.c.l.b16 %v480
      %v553 = vunpack.c.h.b16 %v480
      %v554 = vunpack.c.l.b16 %v481
      %v555 = vunpack.c.h.b16 %v481
      %v556 = vunpack.c.l.b16 %v482
      %v557 = vunpack.c.h.b16 %v482
      %v558 = vunpack.c.l.b16 %v483
      %v559 = vunpack.c.h.b16 %v483
      %v560 = vunpack.c.l.b16 %v484
      %v561 = vunpack.c.h.b16 %v484
      %v562 = vunpack.c.l.b16 %v485
      %v563 = vunpack.c.h.b16 %v485
      %v564 = vunpack.c.l.b16 %v486
      %v565 = vunpack.c.h.b16 %v486
      %v566 = vunpack.c.l.b16 %v487
      %v567 = vunpack.c.h.b16 %v487
      %v568 = vunpack.c.l.b16 %v488
      %v569 = vunpack.c.h.b16 %v488
      %v570 = vunpack.c.l.b16 %v489
      %v571 = vunpack.c.h.b16 %v489
      %v572 = vunpack.c.l.b16 %v490
      %v573 = vunpack.c.h.b16 %v490
      %v574 = vunpack.c.l.b16 %v491
      %v575 = vunpack.c.h.b16 %v491
      %v576 = vunpack.c.l.b16 %v492
      %v577 = vunpack.c.h.b16 %v492
      %v578 = vunpack.c.l.b16 %v493
      %v579 = vunpack.c.h.b16 %v493
      %v580 = vunpack.c.l.b16 %v494
      %v581 = vunpack.c.h.b16 %v494
      %v582 = vunpack.c.l.b16 %v495
      %v583 = vunpack.c.h.b16 %v495
      %v584 = vunpack.c.l.b16 %v496
      %v585 = vunpack.c.h.b16 %v496
      %v586 = vunpack.c.l.b16 %v497
      %v587 = vunpack.c.h.b16 %v497
      %v588 = vunpack.c.l.b16 %v498
      %v589 = vunpack.c.h.b16 %v498
      %v590 = vunpack.c.l.b16 %v499
      %v591 = vunpack.c.h.b16 %v499
      %v592 = vunpack.c.l.b16 %v500
      %v593 = vunpack.c.h.b16 %v500
      %v594 = vunpack.c.l.b16 %v501
      %v595 = vunpack.c.h.b16 %v501
      %v596 = vunpack.c.l.b16 %v502
      %v597 = vunpack.c.h.b16 %v502
      %v598 = vunpack.c.l.b16 %v503
      %v599 = vunpack.c.h.b16 %v503
      %v600 = vunpack.c.l.b16 %v504
      %v601 = vunpack.c.h.b16 %v504
      %v602 = vunpack.c.l.b16 %v505
      %v603 = vunpack.c.h.b16 %v505
      %v604 = vunpack.c.l.b16 %v506
      %v605 = vunpack.c.h.b16 %v506
      %v606 = vunpack.c.l.b16 %v507
      %v607 = vunpack.c.h.b16 %v507
      %v608 = vunpack.c.l.b16 %v508
      %v609 = vunpack.c.h.b16 %v508
      %v610 = vunpack.c.l.b16 %v509
      %v611 = vunpack.c.h.b16 %v509
      %v612 = vpack.c.b16 %v550, %v548
      %v613 = vpack.c.b16 %v551, %v549
      %v614 = vpack.c.b16 %v554, %v552
      %v615 = vpack.c.b16 %v555, %v553
      %v616 = vpack.c.b16 %v558, %v556
      %v617 = vpack.c.b16 %v559, %v557
      %v618 = vpack.c.b16 %v562, %v560
      %v619 = vpack.c.b16 %v563, %v561
      %v620 = vpack.c.b16 %v566, %v564
      %v621 = vpack.c.b16 %v567, %v565
      %v622 = vpack.c.b16 %v570, %v568
      %v623 = vpack.c.b16 %v571, %v569
      %v624 = vpack.c.b16 %v574, %v572
      %v625 = vpack.c.b16 %v575, %v573
      %v626 = vpack.c.b16 %v578, %v576
      %v627 = vpack.c.b16 %v579, %v577
      %v628 = vpack.c.b16 %v582, %v580
      %v629 = vpack.c.b16 %v583, %v581
      %v630 = vpack.c.b16 %v586, %v584
      %v631 = vpack.c.b16 %v587, %v585
      %v632 = vpack.c.b16 %v590, %v588
      %v633 = vpack.c.b16 %v591, %v589
      %v634 = vpack.c.b16 %v594, %v592
      %v635 = vpack.c.b16 %v595, %v593
      %v636 = vpack.c.b16 %v598, %v596
      %v637 = vpack.c.b16 %v599, %v597
      %v638 = vpack.c.b16 %v602, %v600
      %v639 = vpack.c.b16 %v603, %v601
      %v640 = vpack.c.b16 %v606, %v604
      %v641 = vpack.c.b16 %v607, %v605
      %v642 = vpack.c.b16 %v610, %v608
      %v643 = vpack.c.b16 %v611, %v609
      %676 = vmatpush.bf16.msra.mxu0 %v626
      %677 = vmatpush.bf16.msra.mxu0 %v624
      %678 = vmatpush.bf16.msra.mxu0 %v622
      %679 = vmatpush.bf16.msra.mxu0 %v620
      %680 = vmatpush.bf16.msra.mxu0 %v618
      %681 = vmatpush.bf16.msra.mxu0 %v616
      %682 = vmatpush.bf16.msra.mxu0 %v614
      %683 = vmatpush.bf16.msra.mxu0 %v612
      %684 = vmatmul.bf16.gmra.mxu0 %v476
      %v685 = vpop.f32.mrf.mxu0
      %v686 = vadd.f32 %v512, %v685
      %v687 = vpop.f32.mrf.mxu0
      %v688 = vadd.f32 %v512, %v687
      %689 = vdwg.mxu0
      %690 = vmatpush.bf16.msra.mxu0 %v642
      %691 = vmatpush.bf16.msra.mxu0 %v640
      %692 = vmatpush.bf16.msra.mxu0 %v638
      %693 = vmatpush.bf16.msra.mxu0 %v636
      %694 = vmatpush.bf16.msra.mxu0 %v634
      %695 = vmatpush.bf16.msra.mxu0 %v632
      %696 = vmatpush.bf16.msra.mxu0 %v630
      %697 = vmatpush.bf16.msra.mxu0 %v628
      %698 = vmatmul.bf16.gmra.mxu0 %v477
      %v699 = vpop.f32.mrf.mxu0
      %v700 = vadd.f32 %v686, %v699
      %v701 = vpop.f32.mrf.mxu0
      %v702 = vadd.f32 %v688, %v701
      %703 = vdwg.mxu0
      %704 = vmatpush.bf16.msra.mxu0 %v627
      %705 = vmatpush.bf16.msra.mxu0 %v625
      %706 = vmatpush.bf16.msra.mxu0 %v623
      %707 = vmatpush.bf16.msra.mxu0 %v621
      %708 = vmatpush.bf16.msra.mxu0 %v619
      %709 = vmatpush.bf16.msra.mxu0 %v617
      %710 = vmatpush.bf16.msra.mxu0 %v615
      %711 = vmatpush.bf16.msra.mxu0 %v613
      %712 = vmatmul.bf16.gmra.mxu0 %v476
      %v713 = vpop.f32.mrf.mxu0
      %v714 = vadd.f32 %v513, %v713
      %v715 = vpop.f32.mrf.mxu0
      %v716 = vadd.f32 %v513, %v715
      %717 = vdwg.mxu0
      %718 = vmatpush.bf16.msra.mxu0 %v643
      %719 = vmatpush.bf16.msra.mxu0 %v641
      %720 = vmatpush.bf16.msra.mxu0 %v639
      %721 = vmatpush.bf16.msra.mxu0 %v637
      %722 = vmatpush.bf16.msra.mxu0 %v635
      %723 = vmatpush.bf16.msra.mxu0 %v633
      %724 = vmatpush.bf16.msra.mxu0 %v631
      %725 = vmatpush.bf16.msra.mxu0 %v629
      %726 = vmatmul.bf16.gmra.mxu0 %v477
      %v727 = vpop.f32.mrf.mxu0
      %v728 = vadd.f32 %v714, %v727
      %v729 = vpop.f32.mrf.mxu0
      %v730 = vadd.f32 %v716, %v729
      %731 = vdwg.mxu0
      %v732 = vmax.f32 %v700, 0.0
      %v733 = vmax.f32 %v728, 0.0
      %v734 = vmax.f32 %v702, 0.0
      %v735 = vmax.f32 %v730, 0.0
      %v736 = vpack.c.bf16 %v734, %v732
      %v737 = vpack.c.bf16 %v735, %v733
      %v738 = vld [vmem:[%s6] sm:$0xf]
      %v739 = vld [vmem:[%s6 + $0x4] sm:$0xf]
      %v740 = vld [vmem:[%s6 + $0x8] sm:$0xf]
      %v741 = vld [vmem:[%s6 + $0xc] sm:$0xf]
      %v742 = vld [vmem:[%s6 + $0x10] sm:$0xf]
      %v743 = vld [vmem:[%s6 + $0x14] sm:$0xf]
      %v744 = vld [vmem:[%s6 + $0x18] sm:$0xf]
      %v745 = vld [vmem:[%s6 + $0x1c] sm:$0xf]
      %v746 = vld [vmem:[%s6 + $0x20] sm:$0xf]
      %v747 = vld [vmem:[%s6 + $0x24] sm:$0xf]
      %v748 = vld [vmem:[%s6 + $0x28] sm:$0xf]
      %v749 = vld [vmem:[%s6 + $0x2c] sm:$0xf]
      %v750 = vld [vmem:[%s6 + $0x30] sm:$0xf]
      %v751 = vld [vmem:[%s6 + $0x34] sm:$0xf]
      %v752 = vld [vmem:[%s6 + $0x38] sm:$0xf]
      %v753 = vld [vmem:[%s6 + $0x3c] sm:$0xf]
      %v754 = vld [vmem:[%s6 + $0x40] sm:$0xf]
      %v755 = vld [vmem:[%s6 + $0x44] sm:$0xf]
      %v756 = vld [vmem:[%s6 + $0x48] sm:$0xf]
      %v757 = vld [vmem:[%s6 + $0x4c] sm:$0xf]
      %v758 = vld [vmem:[%s6 + $0x50] sm:$0xf]
      %v759 = vld [vmem:[%s6 + $0x54] sm:$0xf]
      %v760 = vld [vmem:[%s6 + $0x58] sm:$0xf]
      %v761 = vld [vmem:[%s6 + $0x5c] sm:$0xf]
      %v762 = vld [vmem:[%s6 + $0x60] sm:$0xf]
      %v763 = vld [vmem:[%s6 + $0x64] sm:$0xf]
      %v764 = vld [vmem:[%s6 + $0x68] sm:$0xf]
      %v765 = vld [vmem:[%s6 + $0x6c] sm:$0xf]
      %v766 = vld [vmem:[%s6 + $0x70] sm:$0xf]
      %v767 = vld [vmem:[%s6 + $0x74] sm:$0xf]
      %v768 = vld [vmem:[%s6 + $0x78] sm:$0xf]
      %v769 = vld [vmem:[%s6 + $0x7c] sm:$0xf]
      %v770 = vld [vmem:[%s7] sm:$0x1]
      %v772 = vperm.slane %v770, 0
      %v806 = vunpack.c.l.b16 %v738
      %v807 = vunpack.c.l.b16 %v739
      %v808 = vunpack.c.l.b16 %v740
      %v809 = vunpack.c.l.b16 %v741
      %v810 = vunpack.c.l.b16 %v742
      %v811 = vunpack.c.l.b16 %v743
      %v812 = vunpack.c.l.b16 %v744
      %v813 = vunpack.c.l.b16 %v745
      %v814 = vunpack.c.l.b16 %v746
      %v815 = vunpack.c.l.b16 %v747
      %v816 = vunpack.c.l.b16 %v748
      %v817 = vunpack.c.l.b16 %v749
      %v818 = vunpack.c.l.b16 %v750
      %v819 = vunpack.c.l.b16 %v751
      %v820 = vunpack.c.l.b16 %v752
      %v821 = vunpack.c.l.b16 %v753
      %v822 = vunpack.c.l.b16 %v754
      %v823 = vunpack.c.l.b16 %v755
      %v824 = vunpack.c.l.b16 %v756
      %v825 = vunpack.c.l.b16 %v757
      %v826 = vunpack.c.l.b16 %v758
      %v827 = vunpack.c.l.b16 %v759
      %v828 = vunpack.c.l.b16 %v760
      %v829 = vunpack.c.l.b16 %v761
      %v830 = vunpack.c.l.b16 %v762
      %v831 = vunpack.c.l.b16 %v763
      %v832 = vunpack.c.l.b16 %v764
      %v833 = vunpack.c.l.b16 %v765
      %v834 = vunpack.c.l.b16 %v766
      %v835 = vunpack.c.l.b16 %v767
      %v836 = vunpack.c.l.b16 %v768
      %v837 = vunpack.c.l.b16 %v769
      %v838 = vpack.c.b16 %v807, %v806
      %v839 = vpack.c.b16 %v809, %v808
      %v840 = vpack.c.b16 %v811, %v810
      %v841 = vpack.c.b16 %v813, %v812
      %v842 = vpack.c.b16 %v815, %v814
      %v843 = vpack.c.b16 %v817, %v816
      %v844 = vpack.c.b16 %v819, %v818
      %v845 = vpack.c.b16 %v821, %v820
      %v846 = vpack.c.b16 %v823, %v822
      %v847 = vpack.c.b16 %v825, %v824
      %v848 = vpack.c.b16 %v827, %v826
      %v849 = vpack.c.b16 %v829, %v828
      %v850 = vpack.c.b16 %v831, %v830
      %v851 = vpack.c.b16 %v833, %v832
      %v852 = vpack.c.b16 %v835, %v834
      %v853 = vpack.c.b16 %v837, %v836
      %870 = vmatpush.bf16.msra.mxu0 %v845
      %871 = vmatpush.bf16.msra.mxu0 %v844
      %872 = vmatpush.bf16.msra.mxu0 %v843
      %873 = vmatpush.bf16.msra.mxu0 %v842
      %874 = vmatpush.bf16.msra.mxu0 %v841
      %875 = vmatpush.bf16.msra.mxu0 %v840
      %876 = vmatpush.bf16.msra.mxu0 %v839
      %877 = vmatpush.bf16.msra.mxu0 %v838
      %878 = vmatmul.bf16.gmra.mxu0 %v736
      %v879 = vpop.f32.mrf.mxu0
      %v880 = vadd.f32 %v772, %v879
      %v881 = vpop.f32.mrf.mxu0
      %v882 = vadd.f32 %v772, %v881
      %883 = vdwg.mxu0
      %884 = vmatpush.bf16.msra.mxu0 %v853
      %885 = vmatpush.bf16.msra.mxu0 %v852
      %886 = vmatpush.bf16.msra.mxu0 %v851
      %887 = vmatpush.bf16.msra.mxu0 %v850
      %888 = vmatpush.bf16.msra.mxu0 %v849
      %889 = vmatpush.bf16.msra.mxu0 %v848
      %890 = vmatpush.bf16.msra.mxu0 %v847
      %891 = vmatpush.bf16.msra.mxu0 %v846
      %892 = vmatmul.bf16.gmra.mxu0 %v737
      %v893 = vpop.f32.mrf.mxu0
      %v894 = vadd.f32 %v880, %v893
      %v895 = vpop.f32.mrf.mxu0
      %v896 = vadd.f32 %v882, %v895
      %897 = vdwg.mxu0
      %v898 = vmax.f32 %v894, 0.0
      %v899 = vmax.f32 %v896, 0.0
      %900 = vst [vmem:[%s329] sm:$0xff] %v898
      %901 = vst [vmem:[%s329 + $0x8] sm:$0xff] %v899
      %s902 = smul.u32 2, %s19
      %p903 = scmp.lt.s32.totalorder %s902, 3
      %s904 = scalar_select %p903, %s902, 3
      %s905 = smul.addr %s904, 8
      %s906 = scalar_lea.vmem %s8, %s905
      // Predicated region
      $region53: #{halliculator_forward.1} parent=51 // pred_check
        %p907 = pneg %p215
      $region54: #{halliculator_forward.1} parent=51 // pred_check_branch
        %909 = sbr.rel (%p907) target = $region56
      $region55: #{halliculator_forward.1} parent=51 // pred_region
        %s910 = smul.u32 2, %s19
      $region56: #{halliculator_forward.1} parent=51 // pred_fallthru
        _
    $region52: #{halliculator_forward.1} parent=5 // pred_fallthru
      _
    %p911 = scmp.le.s32.totalorder 2, %s14
    // Predicated region
    $region57: #{halliculator_forward.1} parent=5 // pred_check
      %p912 = pneg %p911
    $region58: #{halliculator_forward.1} parent=5 // pred_check_branch
      %914 = sbr.rel (%p912) target = $region60
    $region59: #{halliculator_forward.1} parent=5 // pred_region
      %s915 = ssub.s32 %s14, 2
      // Predicated region
      $region61: #{halliculator_forward.1} parent=59 // pred_check
        %p916 = pneg %p221
      $region62: #{halliculator_forward.1} parent=59 // pred_check_branch
        %918 = sbr.rel (%p916) target = $region64
      $region63: #{halliculator_forward.1} parent=59 // pred_region
        %s919 = smul.u32 2, %s20
        %p920 = scmp.lt.s32.totalorder %s919, 3
        %s921 = scalar_select %p920, %s919, 3
        %s922 = smul.addr %s921, 8
        %s923 = scalar_lea.vmem %s8, %s922
      $region64: #{halliculator_forward.1} parent=59 // pred_fallthru
        _
    $region60: #{halliculator_forward.1} parent=5 // pred_fallthru
      _
  $region6: #{halliculator_forward.1} parent=0 // loop_footer
    %s18 = sadd.s32 1, %s14
  $region7: #{halliculator_forward.1} parent=0 // loop_footer_branch
    %13 = sbr.rel target = $region3
  $region8: #{halliculator_forward.1} parent=0 // loop_exit
    _

</llo_original>
